<compile_context>
chip_gen: v7x
topology: tpu7x:2x2x1
jax: 0.10.0
libtpu: 0.0.40
codegen_flags: <defaults>
</compile_context>

<pallas_src>
import math

import jax
import jax.numpy as jnp
from jax.experimental import pallas as pl
from jax.experimental.pallas import tpu as pltpu

HIDDEN = 50          # hidden width of the original module
H_PAD = 128          # hidden padded to a full lane group
OUT_PAD = 128        # fused head output width (disturb lanes + magnitude lane)


def _make_hinf_kernel(T: float, wp: int, nm: int):
    inv_sqrt_2pi = 1.0 / math.sqrt(2.0 * math.pi)
    pdf_scale = 20.0 * inv_sqrt_2pi
    two_over_T = 2.0 / T

    def kernel(xut_ref, w1_ref, b1_ref, w2_ref, b2_ref, wh_ref, bh_ref, p_ref):
        xut = xut_ref[...]                                   # (TB, nm+1) f32
        t = xut[:, nm:nm + 1]                                # (TB, 1)  f32

        # net = Linear(n+m,50) -> Sigmoid -> Linear(50,50) -> Sigmoid
        # bf16 operands, f32 accumulation.  The t column hits a zero row of w1;
        # padded lanes carry sigmoid(0)=0.5 but the next layer's padded rows
        # are zero, so the math is exact.
        xb = xut.astype(jnp.bfloat16)
        h1 = jax.nn.sigmoid(
            jnp.dot(xb, w1_ref[...], preferred_element_type=jnp.float32)
            + b1_ref[...]).astype(jnp.bfloat16)              # (TB, 128)
        h2 = jax.nn.sigmoid(
            jnp.dot(h1, w2_ref[...], preferred_element_type=jnp.float32)
            + b2_ref[...]).astype(jnp.bfloat16)              # (TB, 128)

        # Fused heads: lanes [0, wp) = disturb_layer, lane OUT_PAD-1 = magnitude
        # pre-activation, lanes wp..126 are exactly zero.
        y = (jnp.dot(h2, wh_ref[...], preferred_element_type=jnp.float32)
             + bh_ref[...])                                  # (TB, 128) f32

        mag_pre = y[:, OUT_PAD - 1:OUT_PAD]                  # (TB, 1)
        magnitude = jnp.tanh(mag_pre)                        # (TB, 1)

        # ||disturb||^2: full-width lane reduce minus the magnitude lane
        # (padded lanes are exactly zero, so this is exact up to rounding).
        sumsq = jnp.sum(y * y, axis=1, keepdims=True) - mag_pre * mag_pre

        # max_norm = 20 * N(0,1).pdf(2*t/T)
        z = two_over_T * t
        max_norm = pdf_scale * jnp.exp(-0.5 * z * z)         # (TB, 1)

        # p = disturb / ||disturb|| * max_norm * magnitude, collapsed into one
        # per-row scale (exp / tanh / rsqrt all ride the EUP slot).
        # rsqrt(0) -> inf matches the reference's divide-by-zero behaviour.
        scale = max_norm * magnitude * jax.lax.rsqrt(sumsq)  # (TB, 1)
        p_ref[...] = (y[:, :wp] * scale).astype(p_ref.dtype)

    return kernel


def pack_params(params, n, m):
    """Pad / cast the module parameters ONCE (hoisted out of the forward path)."""
    f32, bf16 = jnp.float32, jnp.bfloat16
    H = params["w1"].shape[1]          # 50
    wp = params["wd"].shape[1]
    assert H <= H_PAD and wp + 1 <= OUT_PAD

    # first layer: extra zero row for the appended t column, zero cols to 128
    w1 = jnp.pad(params["w1"].astype(f32), ((0, 1), (0, H_PAD - H)))          # (n+m+1,128)
    b1 = jnp.pad(params["b1"].astype(f32), ((0, 0), (0, H_PAD - H)))          # (1,128)
    w2 = jnp.pad(params["w2"].astype(f32), ((0, H_PAD - H), (0, H_PAD - H)))  # (128,128)
    b2 = jnp.pad(params["b2"].astype(f32), ((0, 0), (0, H_PAD - H)))          # (1,128)

    # fused head: [wd | zeros | wm] -> (H_PAD, OUT_PAD); zeros in between make
    # the in-kernel sum(y^2) - mag_pre^2 exact.
    wh = jnp.concatenate(
        [params["wd"].astype(f32),
         jnp.zeros((H, OUT_PAD - wp - 1), f32),
         params["wm"].astype(f32)], axis=1)
    wh = jnp.pad(wh, ((0, H_PAD - H), (0, 0)))                                # (128,128)
    bh = jnp.concatenate(
        [params["bd"].astype(f32),
         jnp.zeros((1, OUT_PAD - wp - 1), f32),
         params["bm"].astype(f32)], axis=1)                                   # (1,128)

    return {
        "w1": w1.astype(bf16), "b1": b1,
        "w2": w2.astype(bf16), "b2": b2,
        "wh": wh.astype(bf16), "bh": bh,
        "wp": int(wp), "nm": int(n + m),
    }


def hinf_disturb_forward(x, u, t, packed, T, block_rows=2048):
    """x:(B,n), u:(B,m), t:(B,), packed = pack_params(...) -> p:(B,wp)."""
    f32 = jnp.float32
    B, n = x.shape
    m = u.shape[1]
    nm = packed["nm"]
    wp = packed["wp"]
    assert nm == n + m

    # single pipelined activation stream: [x | u | t]
    xut = jnp.concatenate(
        [x.astype(f32), u.astype(f32), t.reshape(B, 1).astype(f32)], axis=1)  # (B, nm+1)

    # ---- batch tiling: >= 2 grid steps (v7x megacore), TB multiple of 8 ----
    TB = max(8, ((pl.cdiv(B, 2) + 7) // 8) * 8)
    TB = min(TB, block_rows)
    grid = (pl.cdiv(B, TB),)

    row = lambda feat: pl.BlockSpec((TB, feat), lambda i: (i, 0))
    const = lambda r, c: pl.BlockSpec((r, c), lambda i: (0, 0))

    in_specs = [
        row(nm + 1),                   # [x | u | t]
        const(nm + 1, H_PAD),          # w1 (bf16)
        const(1, H_PAD),               # b1 (f32)
        const(H_PAD, H_PAD),           # w2 (bf16)
        const(1, H_PAD),               # b2 (f32)
        const(H_PAD, OUT_PAD),         # fused head weight (bf16)
        const(1, OUT_PAD),             # fused head bias (f32)
    ]
    out_specs = row(wp)                # (TB, wp) -- only real lanes are written

    kernel = _make_hinf_kernel(T, wp, nm)

    return pl.pallas_call(
        kernel,
        out_shape=jax.ShapeDtypeStruct((B, wp), jnp.float32),
        grid=grid,
        in_specs=in_specs,
        out_specs=out_specs,
        compiler_params=pltpu.CompilerParams(
            dimension_semantics=("parallel",),     # megacore sharding on v7x
            vmem_limit_bytes=32 * 1024 * 1024),    # ample; safe on v5e/v6e/v7x
    )(xut, packed["w1"], packed["b1"], packed["w2"], packed["b2"],
      packed["wh"], packed["bh"])


def init_params(key, n, m, wp, hidden=HIDDEN):
    """Deterministic synthetic parameters (PyTorch Linear shapes, stored (in, out))."""
    ks = jax.random.split(key, 8)

    def uinit(k, fan_in, shape):
        bound = 1.0 / math.sqrt(fan_in)
        return jax.random.uniform(k, shape, jnp.float32, -bound, bound)

    return {
        "w1": uinit(ks[0], n + m, (n + m, hidden)),
        "b1": uinit(ks[1], n + m, (1, hidden)),
        "w2": uinit(ks[2], hidden, (hidden, hidden)),
        "b2": uinit(ks[3], hidden, (1, hidden)),
        "wd": uinit(ks[4], hidden, (hidden, wp)),
        "bd": uinit(ks[5], hidden, (1, wp)),
        "wm": uinit(ks[6], hidden, (hidden, 1)),
        # last parameter of magnitude_layer (the bias) is scaled by 10 in __init__
        "bm": uinit(ks[7], hidden, (1, 1)) * 10.0,
    }


def reference_forward(x, u, t, params, T):
    """Pure-JAX f32 reference of the PyTorch forward."""
    xu = jnp.concatenate([x, u], axis=1)
    h1 = jax.nn.sigmoid(xu @ params["w1"] + params["b1"])
    h2 = jax.nn.sigmoid(h1 @ params["w2"] + params["b2"])
    disturb = h2 @ params["wd"] + params["bd"]
    magnitude = jnp.tanh(h2 @ params["wm"] + params["bm"])
    disturb_norm = jnp.linalg.norm(disturb, axis=1, keepdims=True)
    z = 2.0 * t.reshape(-1, 1) / T
    max_norm = 20.0 * jnp.exp(-0.5 * z * z) / jnp.sqrt(2.0 * jnp.pi)
    return disturb / disturb_norm * max_norm * magnitude


# TODO(synk): the `self.disturbance is not None` override branch (constant
# disturbance, magnitude=1) is runtime state on the module and is not modeled.

if __name__ == "__main__":
    # Small shapes consistent with the module: state n=4, control m=4, wp=6.
    B, n, m, wp, T = 16, 4, 4, 6, 5.0

    key = jax.random.PRNGKey(0)
    kx, ku, kt, kp = jax.random.split(key, 4)

    x = jax.random.normal(kx, (B, n), jnp.float32)
    u = jax.random.normal(ku, (B, m), jnp.float32)
    t = jax.random.uniform(kt, (B,), jnp.float32, 0.0, T)

    params = init_params(kp, n, m, wp)
    packed = pack_params(params, n, m)     # pad / cast once, reused across calls

    # B=16 -> TB=8 -> grid=(2,): exercises the multi-step pipelined grid.
    p = hinf_disturb_forward(x, u, t, packed, T)
    p = jax.block_until_ready(p)

    p_ref = reference_forward(x, u, t, params, T)
    assert p.shape == (B, wp)

    # bf16 matmul operands (f32 accumulate) vs f32 reference: use a tolerance
    # scaled to the output magnitude (direction errors are not proportional to
    # individual entries, so a global-scale atol is the right check).
    err = jnp.max(jnp.abs(p - p_ref))
    tol = 0.05 * jnp.max(jnp.abs(p_ref)) + 1e-3
    assert err <= tol, f"mismatch vs reference: max abs err {err} > tol {tol}"

    print("KERNEL_OK")
</pallas_src>

<mosaic_0001>
module attributes {stable_mosaic.version = 11 : i64} {
  func.func @kernel(%arg0: i32, %arg1: memref<8x9xf32, #tpu.memory_space<vmem>>, %arg2: memref<9x128xbf16, #tpu.memory_space<vmem>>, %arg3: memref<1x128xf32, #tpu.memory_space<vmem>>, %arg4: memref<128x128xbf16, #tpu.memory_space<vmem>>, %arg5: memref<1x128xf32, #tpu.memory_space<vmem>>, %arg6: memref<128x128xbf16, #tpu.memory_space<vmem>>, %arg7: memref<1x128xf32, #tpu.memory_space<vmem>>, %arg8: memref<8x6xf32, #tpu.memory_space<vmem>>) attributes {dimension_semantics = [#tpu.dimension_semantics<parallel>], iteration_bounds = array<i64: 2>, scalar_prefetch = 0 : i64, scratch_operands = 0 : i64, tpu.core_type = #tpu.core_type<tc>, window_params = [{transform_indices = @transform_0, window_bounds = array<i64: 8, 9>}, {pipeline_mode = #tpu.pipeline_mode<synchronous>, transform_indices = @transform_1, window_bounds = array<i64: 9, 128>}, {pipeline_mode = #tpu.pipeline_mode<synchronous>, transform_indices = @transform_2, window_bounds = array<i64: 1, 128>}, {pipeline_mode = #tpu.pipeline_mode<synchronous>, transform_indices = @transform_3, window_bounds = array<i64: 128, 128>}, {pipeline_mode = #tpu.pipeline_mode<synchronous>, transform_indices = @transform_4, window_bounds = array<i64: 1, 128>}, {pipeline_mode = #tpu.pipeline_mode<synchronous>, transform_indices = @transform_5, window_bounds = array<i64: 128, 128>}, {pipeline_mode = #tpu.pipeline_mode<synchronous>, transform_indices = @transform_6, window_bounds = array<i64: 1, 128>}, {transform_indices = @transform_7, window_bounds = array<i64: 8, 6>}]} {
    %c0 = arith.constant 0 : index
    %c0_0 = arith.constant 0 : index
    %0 = vector.load %arg1[%c0, %c0_0] : memref<8x9xf32, #tpu.memory_space<vmem>>, vector<8x9xf32>
    %1 = vector.extract_strided_slice %0 {offsets = [0, 8], sizes = [8, 1], strides = [1, 1]} : vector<8x9xf32> to vector<8x1xf32>
    %2 = arith.truncf %0 : vector<8x9xf32> to vector<8x9xbf16>
    %c0_1 = arith.constant 0 : index
    %c0_2 = arith.constant 0 : index
    %3 = vector.load %arg2[%c0_1, %c0_2] : memref<9x128xbf16, #tpu.memory_space<vmem>>, vector<9x128xbf16>
    %cst = arith.constant dense<0.000000e+00> : vector<8x128xf32>
    %4 = tpu.matmul %2, %3, %cst {dimension_numbers = #tpu.dot_dimension_numbers<[1], [0], [0], [1], [0, 0, 1, 1], [], []>} : vector<8x9xbf16>, vector<9x128xbf16>, vector<8x128xf32> -> vector<8x128xf32>
    %c0_3 = arith.constant 0 : index
    %c0_4 = arith.constant 0 : index
    %5 = vector.load %arg3[%c0_3, %c0_4] : memref<1x128xf32, #tpu.memory_space<vmem>>, vector<1x128xf32>
    %6 = vector.broadcast %5 : vector<1x128xf32> to vector<8x128xf32>
    %7 = arith.addf %4, %6 : vector<8x128xf32>
    %8 = arith.negf %7 : vector<8x128xf32>
    %9 = math.exp %8 : vector<8x128xf32>
    %cst_5 = arith.constant 1.000000e+00 : f32
    %10 = vector.broadcast %cst_5 : f32 to vector<8x128xf32>
    %11 = arith.addf %10, %9 : vector<8x128xf32>
    %12 = arith.divf %10, %11 : vector<8x128xf32>
    %13 = arith.truncf %12 : vector<8x128xf32> to vector<8x128xbf16>
    %c0_6 = arith.constant 0 : index
    %c0_7 = arith.constant 0 : index
    %14 = vector.load %arg4[%c0_6, %c0_7] : memref<128x128xbf16, #tpu.memory_space<vmem>>, vector<128x128xbf16>
    %cst_8 = arith.constant dense<0.000000e+00> : vector<8x128xf32>
    %15 = tpu.matmul %13, %14, %cst_8 {dimension_numbers = #tpu.dot_dimension_numbers<[1], [0], [0], [1], [0, 0, 1, 1], [], []>} : vector<8x128xbf16>, vector<128x128xbf16>, vector<8x128xf32> -> vector<8x128xf32>
    %c0_9 = arith.constant 0 : index
    %c0_10 = arith.constant 0 : index
    %16 = vector.load %arg5[%c0_9, %c0_10] : memref<1x128xf32, #tpu.memory_space<vmem>>, vector<1x128xf32>
    %17 = vector.broadcast %16 : vector<1x128xf32> to vector<8x128xf32>
    %18 = arith.addf %15, %17 : vector<8x128xf32>
    %19 = arith.negf %18 : vector<8x128xf32>
    %20 = math.exp %19 : vector<8x128xf32>
    %cst_11 = arith.constant 1.000000e+00 : f32
    %21 = vector.broadcast %cst_11 : f32 to vector<8x128xf32>
    %22 = arith.addf %21, %20 : vector<8x128xf32>
    %23 = arith.divf %21, %22 : vector<8x128xf32>
    %24 = arith.truncf %23 : vector<8x128xf32> to vector<8x128xbf16>
    %c0_12 = arith.constant 0 : index
    %c0_13 = arith.constant 0 : index
    %25 = vector.load %arg6[%c0_12, %c0_13] : memref<128x128xbf16, #tpu.memory_space<vmem>>, vector<128x128xbf16>
    %cst_14 = arith.constant dense<0.000000e+00> : vector<8x128xf32>
    %26 = tpu.matmul %24, %25, %cst_14 {dimension_numbers = #tpu.dot_dimension_numbers<[1], [0], [0], [1], [0, 0, 1, 1], [], []>} : vector<8x128xbf16>, vector<128x128xbf16>, vector<8x128xf32> -> vector<8x128xf32>
    %c0_15 = arith.constant 0 : index
    %c0_16 = arith.constant 0 : index
    %27 = vector.load %arg7[%c0_15, %c0_16] : memref<1x128xf32, #tpu.memory_space<vmem>>, vector<1x128xf32>
    %28 = vector.broadcast %27 : vector<1x128xf32> to vector<8x128xf32>
    %29 = arith.addf %26, %28 : vector<8x128xf32>
    %30 = vector.extract_strided_slice %29 {offsets = [0, 127], sizes = [8, 1], strides = [1, 1]} : vector<8x128xf32> to vector<8x1xf32>
    %31 = math.tanh %30 : vector<8x1xf32>
    %32 = arith.mulf %29, %29 : vector<8x128xf32>
    %cst_17 = arith.constant dense<0.000000e+00> : vector<8xf32>
    %33 = vector.multi_reduction <add>, %32, %cst_17 [1] : vector<8x128xf32> to vector<8xf32>
    %34 = vector.shape_cast %33 : vector<8xf32> to vector<8x1xf32>
    %35 = arith.mulf %30, %30 : vector<8x1xf32>
    %36 = arith.subf %34, %35 : vector<8x1xf32>
    %cst_18 = arith.constant 4.000000e-01 : f32
    %37 = vector.broadcast %cst_18 : f32 to vector<8x1xf32>
    %38 = arith.mulf %37, %1 : vector<8x1xf32>
    %cst_19 = arith.constant -5.000000e-01 : f32
    %39 = vector.broadcast %cst_19 : f32 to vector<8x1xf32>
    %40 = arith.mulf %39, %38 : vector<8x1xf32>
    %41 = arith.mulf %40, %38 : vector<8x1xf32>
    %42 = math.exp %41 : vector<8x1xf32>
    %cst_20 = arith.constant 7.97884559 : f32
    %43 = vector.broadcast %cst_20 : f32 to vector<8x1xf32>
    %44 = arith.mulf %43, %42 : vector<8x1xf32>
    %45 = arith.mulf %44, %31 : vector<8x1xf32>
    %46 = math.rsqrt %36 : vector<8x1xf32>
    %47 = arith.mulf %45, %46 : vector<8x1xf32>
    %48 = vector.extract_strided_slice %29 {offsets = [0, 0], sizes = [8, 6], strides = [1, 1]} : vector<8x128xf32> to vector<8x6xf32>
    %49 = vector.broadcast %47 : vector<8x1xf32> to vector<8x6xf32>
    %50 = arith.mulf %48, %49 : vector<8x6xf32>
    %c0_21 = arith.constant 0 : index
    %c0_22 = arith.constant 0 : index
    %51 = vector.load %arg8[%c0_21, %c0_22] : memref<8x6xf32, #tpu.memory_space<vmem>>, vector<8x6xf32>
    tpu.vector_store %arg8[%c0_21, %c0_22], %50 {strides = array<i32>} : memref<8x6xf32, #tpu.memory_space<vmem>>, vector<8x6xf32>,
    return
  }
  func.func @transform_0(%arg0: i32) -> (i32, i32) {
    %c0_i32 = arith.constant 0 : i32
    %c0_i32_0 = arith.constant 0 : i32
    return %arg0, %c0_i32 : i32, i32
  }
  func.func @transform_1(%arg0: i32) -> (i32, i32) {
    %c0_i32 = arith.constant 0 : i32
    %c0_i32_0 = arith.constant 0 : i32
    %c0_i32_1 = arith.constant 0 : i32
    return %c0_i32, %c0_i32_0 : i32, i32
  }
  func.func @transform_2(%arg0: i32) -> (i32, i32) {
    %c0_i32 = arith.constant 0 : i32
    %c0_i32_0 = arith.constant 0 : i32
    %c0_i32_1 = arith.constant 0 : i32
    return %c0_i32, %c0_i32_0 : i32, i32
  }
  func.func @transform_3(%arg0: i32) -> (i32, i32) {
    %c0_i32 = arith.constant 0 : i32
    %c0_i32_0 = arith.constant 0 : i32
    %c0_i32_1 = arith.constant 0 : i32
    return %c0_i32, %c0_i32_0 : i32, i32
  }
  func.func @transform_4(%arg0: i32) -> (i32, i32) {
    %c0_i32 = arith.constant 0 : i32
    %c0_i32_0 = arith.constant 0 : i32
    %c0_i32_1 = arith.constant 0 : i32
    return %c0_i32, %c0_i32_0 : i32, i32
  }
  func.func @transform_5(%arg0: i32) -> (i32, i32) {
    %c0_i32 = arith.constant 0 : i32
    %c0_i32_0 = arith.constant 0 : i32
    %c0_i32_1 = arith.constant 0 : i32
    return %c0_i32, %c0_i32_0 : i32, i32
  }
  func.func @transform_6(%arg0: i32) -> (i32, i32) {
    %c0_i32 = arith.constant 0 : i32
    %c0_i32_0 = arith.constant 0 : i32
    %c0_i32_1 = arith.constant 0 : i32
    return %c0_i32, %c0_i32_0 : i32, i32
  }
  func.func @transform_7(%arg0: i32) -> (i32, i32) {
    %c0_i32 = arith.constant 0 : i32
    %c0_i32_0 = arith.constant 0 : i32
    return %arg0, %c0_i32 : i32, i32
  }
}

</mosaic_0001>

<llo_original>
// kernel: tpu_custom_call.1
$region0: #{tpu_custom_call.1}
  #allocation0 [shape = 'u32[]', space=smem, size = 0x4, offset = 0x4, fixed_abs, tag = 'smem constant byte address 0x4 - core index']
  #allocation1 [shape = 'u32[144,128]{1,0:T(1,128)}', space=vmem, size = 0x12000, scoped, tag = 'internal scratch']
  %s0 = inlined_call_operand.hbm [shape: f32[16,9], index: 0, kind: input, shape index: {}]
  %s1 = inlined_call_operand.hbm [shape: bf16[9,128], index: 1, kind: input, shape index: {}]
  %s2 = inlined_call_operand.vmem [shape: f32[1,128], index: 2, kind: input, shape index: {}]
  %s3 = inlined_call_operand.hbm [shape: bf16[128,128], index: 3, kind: input, shape index: {}]
  %s4 = inlined_call_operand.vmem [shape: f32[1,128], index: 4, kind: input, shape index: {}]
  %s5 = inlined_call_operand.hbm [shape: bf16[128,128], index: 5, kind: input, shape index: {}]
  %s6 = inlined_call_operand.vmem [shape: f32[1,128], index: 6, kind: input, shape index: {}]
  %s7 = inlined_call_operand.vmem [shape: f32[16,6], index: 7, kind: output, shape index: {}]
  %s8 = sld [smem:[#allocation0]]
  $region77: #{tpu_custom_call.1} parent=0
    _
  %s10 = ssub.s32 1, %s8
  %s11 = scalar_select 0, %s10, %s8
  $region1: #{tpu_custom_call.1} parent=0
    #allocation2 [shape = 'u8[8192]{0}', space=vmem, size = 0x2000, scoped, tag = 'input window, operand 0']
    #allocation3 [shape = 's32[2]{0}', space=sflag, size = 0x8, scoped, tag = 'scoped memory for tpu_custom_call.1']
    #allocation4 [shape = 'u8[4096]{0}', space=vmem, size = 0x1000, scoped, tag = 'input window, operand 1, single buffered']
    #allocation5 [shape = 's32[1]{0}', space=sflag, size = 0x4, scoped, tag = 'scoped memory for tpu_custom_call.1']
    #allocation6 [shape = 'u8[32768]{0}', space=vmem, size = 0x8000, scoped, tag = 'input window, operand 3, single buffered']
    #allocation7 [shape = 'u8[32768]{0}', space=vmem, size = 0x8000, scoped, tag = 'input window, operand 5, single buffered']
    #allocation8 [shape = 's32[1]{0}', space=sflag, size = 0x4, scoped, tag = 'scoped memory for tpu_custom_call.1']
    %12 = vsyncpa [#allocation3], 0
    %s13 = scalar_lea.sflag [#allocation3], 1
    %14 = vsyncpa %s13, 0
    %15 = vsyncpa [#allocation5], 0
    %16 = vsyncpa [#allocation8], 0
    loop: start=0, step=1, limit=4
    $region2: #{tpu_custom_call.1} parent=1 // loop_pre_header
      _
    $region3: #{tpu_custom_call.1} parent=1 // loop_header
      %s18 = sphi 0, %s22
      %p19 = scmp.ge.s32.totalorder %s18, 4
      %s28 = sphi 0, %s30
      %s31 = sphi 0, %s28
      %s32 = sphi 0, %s31
      %s48 = sphi 0, %s32
      %s52 = sphi 0, %s52
      %s54 = sphi 0, %s52
      %s55 = sphi 0, %s54
      %s69 = sphi 0, %s55
      %s73 = sphi 0, %s73
      %s75 = sphi 0, %s73
      %s76 = sphi 0, %s75
      %s90 = sphi 0, %s76
      %s94 = sphi 0, %s94
      %s96 = sphi 0, %s94
      %s97 = sphi 0, %s96
      %s111 = sphi 0, %s97
      %s115 = sphi 0, %s115
      %s117 = sphi 0, %s115
      %s118 = sphi 0, %s117
      %s132 = sphi 0, %s118
      %s136 = sphi 0, %s136
      %s138 = sphi 0, %s136
      %s139 = sphi 0, %s138
      %s153 = sphi 0, %s139
      %s157 = sphi 0, %s157
      %s159 = sphi 0, %s157
      %s160 = sphi 0, %s159
      %s174 = sphi 0, %s160
      %s180 = sphi 0, %s182
      %s183 = sphi 0, %s180
      %s184 = sphi 0, %s183
      %s200 = sphi 0, %s184
    $region4: #{tpu_custom_call.1} parent=1 // loop_header_branch
      %21 = sbr.rel (%p19) target = $region8
    $region5: #{tpu_custom_call.1} parent=1 // loop_body
      %s23 = ssub.s32 %s18, 1
      %s24 = ssub.s32 %s18, 2
      %s25 = sadd.s32 %s18, 1
      %s26 = ssub.s32 %s18, %s25
      %p27 = scmp.eq.s32.totalorder %s26, 0
      %s29 = sadd.s32 %s28, 1
      %s30 = scalar_select %p27, %s28, %s29
      %p33 = pneg %p27
      %p34 = scmp.eq.s32.totalorder %s18, 1
      %p35 = por %p33, %p34
      %p36 = scmp.ne.s32.totalorder %s28, %s31
      %p37 = scmp.eq.s32.totalorder %s18, 0
      %p38 = por %p36, %p37
      %p39 = scmp.ne.s32.totalorder %s28, %s31
      %p40 = scmp.eq.s32.totalorder %s23, 1
      %p41 = por %p39, %p40
      %p42 = scmp.ne.s32.totalorder %s31, %s32
      %p43 = scmp.eq.s32.totalorder %s23, 0
      %p44 = por %p42, %p43
      %p45 = scmp.ne.s32.totalorder %s31, %s32
      %p46 = scmp.eq.s32.totalorder %s24, 1
      %p47 = por %p45, %p46
      %p49 = scmp.ne.s32.totalorder %s32, %s48
      %p50 = scmp.eq.s32.totalorder %s24, 0
      %p51 = por %p49, %p50
      %s53 = sadd.s32 %s52, 1
      %p56 = scmp.eq.s32.totalorder %s18, 1
      %p57 = scmp.ne.s32.totalorder %s52, %s54
      %p58 = scmp.eq.s32.totalorder %s18, 0
      %p59 = por %p57, %p58
      %p60 = scmp.ne.s32.totalorder %s52, %s54
      %p61 = scmp.eq.s32.totalorder %s23, 1
      %p62 = por %p60, %p61
      %p63 = scmp.ne.s32.totalorder %s54, %s55
      %p64 = scmp.eq.s32.totalorder %s23, 0
      %p65 = por %p63, %p64
      %p66 = scmp.ne.s32.totalorder %s54, %s55
      %p67 = scmp.eq.s32.totalorder %s24, 1
      %p68 = por %p66, %p67
      %p70 = scmp.ne.s32.totalorder %s55, %s69
      %p71 = scmp.eq.s32.totalorder %s24, 0
      %p72 = por %p70, %p71
      %s74 = sadd.s32 %s73, 1
      %p77 = scmp.eq.s32.totalorder %s18, 1
      %p78 = scmp.ne.s32.totalorder %s73, %s75
      %p79 = scmp.eq.s32.totalorder %s18, 0
      %p80 = por %p78, %p79
      %p81 = scmp.ne.s32.totalorder %s73, %s75
      %p82 = scmp.eq.s32.totalorder %s23, 1
      %p83 = por %p81, %p82
      %p84 = scmp.ne.s32.totalorder %s75, %s76
      %p85 = scmp.eq.s32.totalorder %s23, 0
      %p86 = por %p84, %p85
      %p87 = scmp.ne.s32.totalorder %s75, %s76
      %p88 = scmp.eq.s32.totalorder %s24, 1
      %p89 = por %p87, %p88
      %p91 = scmp.ne.s32.totalorder %s76, %s90
      %p92 = scmp.eq.s32.totalorder %s24, 0
      %p93 = por %p91, %p92
      %s95 = sadd.s32 %s94, 1
      %p98 = scmp.eq.s32.totalorder %s18, 1
      %p99 = scmp.ne.s32.totalorder %s94, %s96
      %p100 = scmp.eq.s32.totalorder %s18, 0
      %p101 = por %p99, %p100
      %p102 = scmp.ne.s32.totalorder %s94, %s96
      %p103 = scmp.eq.s32.totalorder %s23, 1
      %p104 = por %p102, %p103
      %p105 = scmp.ne.s32.totalorder %s96, %s97
      %p106 = scmp.eq.s32.totalorder %s23, 0
      %p107 = por %p105, %p106
      %p108 = scmp.ne.s32.totalorder %s96, %s97
      %p109 = scmp.eq.s32.totalorder %s24, 1
      %p110 = por %p108, %p109
      %p112 = scmp.ne.s32.totalorder %s97, %s111
      %p113 = scmp.eq.s32.totalorder %s24, 0
      %p114 = por %p112, %p113
      %s116 = sadd.s32 %s115, 1
      %p119 = scmp.eq.s32.totalorder %s18, 1
      %p120 = scmp.ne.s32.totalorder %s115, %s117
      %p121 = scmp.eq.s32.totalorder %s18, 0
      %p122 = por %p120, %p121
      %p123 = scmp.ne.s32.totalorder %s115, %s117
      %p124 = scmp.eq.s32.totalorder %s23, 1
      %p125 = por %p123, %p124
      %p126 = scmp.ne.s32.totalorder %s117, %s118
      %p127 = scmp.eq.s32.totalorder %s23, 0
      %p128 = por %p126, %p127
      %p129 = scmp.ne.s32.totalorder %s117, %s118
      %p130 = scmp.eq.s32.totalorder %s24, 1
      %p131 = por %p129, %p130
      %p133 = scmp.ne.s32.totalorder %s118, %s132
      %p134 = scmp.eq.s32.totalorder %s24, 0
      %p135 = por %p133, %p134
      %s137 = sadd.s32 %s136, 1
      %p140 = scmp.eq.s32.totalorder %s18, 1
      %p141 = scmp.ne.s32.totalorder %s136, %s138
      %p142 = scmp.eq.s32.totalorder %s18, 0
      %p143 = por %p141, %p142
      %p144 = scmp.ne.s32.totalorder %s136, %s138
      %p145 = scmp.eq.s32.totalorder %s23, 1
      %p146 = por %p144, %p145
      %p147 = scmp.ne.s32.totalorder %s138, %s139
      %p148 = scmp.eq.s32.totalorder %s23, 0
      %p149 = por %p147, %p148
      %p150 = scmp.ne.s32.totalorder %s138, %s139
      %p151 = scmp.eq.s32.totalorder %s24, 1
      %p152 = por %p150, %p151
      %p154 = scmp.ne.s32.totalorder %s139, %s153
      %p155 = scmp.eq.s32.totalorder %s24, 0
      %p156 = por %p154, %p155
      %s158 = sadd.s32 %s157, 1
      %p161 = scmp.eq.s32.totalorder %s18, 1
      %p162 = scmp.ne.s32.totalorder %s157, %s159
      %p163 = scmp.eq.s32.totalorder %s18, 0
      %p164 = por %p162, %p163
      %p165 = scmp.ne.s32.totalorder %s157, %s159
      %p166 = scmp.eq.s32.totalorder %s23, 1
      %p167 = por %p165, %p166
      %p168 = scmp.ne.s32.totalorder %s159, %s160
      %p169 = scmp.eq.s32.totalorder %s23, 0
      %p170 = por %p168, %p169
      %p171 = scmp.ne.s32.totalorder %s159, %s160
      %p172 = scmp.eq.s32.totalorder %s24, 1
      %p173 = por %p171, %p172
      %p175 = scmp.ne.s32.totalorder %s160, %s174
      %p176 = scmp.eq.s32.totalorder %s24, 0
      %p177 = por %p175, %p176
      %s178 = ssub.s32 %s18, %s25
      %p179 = scmp.eq.s32.totalorder %s178, 0
      %s181 = sadd.s32 %s180, 1
      %s182 = scalar_select %p179, %s180, %s181
      %p185 = pneg %p179
      %p186 = scmp.eq.s32.totalorder %s18, 1
      %p187 = por %p185, %p186
      %p188 = scmp.ne.s32.totalorder %s180, %s183
      %p189 = scmp.eq.s32.totalorder %s18, 0
      %p190 = por %p188, %p189
      %p191 = scmp.ne.s32.totalorder %s180, %s183
      %p192 = scmp.eq.s32.totalorder %s23, 1
      %p193 = por %p191, %p192
      %p194 = scmp.ne.s32.totalorder %s183, %s184
      %p195 = scmp.eq.s32.totalorder %s23, 0
      %p196 = por %p194, %p195
      %p197 = scmp.ne.s32.totalorder %s183, %s184
      %p198 = scmp.eq.s32.totalorder %s24, 1
      %p199 = por %p197, %p198
      %p201 = scmp.ne.s32.totalorder %s184, %s200
      %p202 = scmp.eq.s32.totalorder %s24, 0
      %p203 = por %p201, %p202
      %p204 = scmp.le.s32.totalorder 1, %s18
      %p205 = scmp.lt.s32.totalorder %s18, 3
      %p206 = pnand %p204, %p205
      %p207 = pneg %p206
      // Predicated region
      $region9: #{tpu_custom_call.1} parent=5 // pred_check
        _
      $region10: #{tpu_custom_call.1} parent=5 // pred_check_branch
        %209 = sbr.rel (%p206) target = $region12
      $region11: #{tpu_custom_call.1} parent=5 // pred_region
        %s210 = ssub.s32 %s18, 1
        // Predicated region
        $region13: #{tpu_custom_call.1} parent=11 // pred_check
          %p211 = pneg %p65
        $region14: #{tpu_custom_call.1} parent=11 // pred_check_branch
          %213 = sbr.rel (%p211) target = $region16
        $region15: #{tpu_custom_call.1} parent=11 // pred_region
          %s215 = ssub.s32 128, 128
          %216 = vsyncadd [#allocation5], %s215
          %s217 = sshll.u32 [#allocation4], 4
          %s218 = int_to_ptr.vmem [resolvable:$true] %s217
          %223 = dma.hbm_to_vmem [thread:$0]  %s1, 128, %s218, [#allocation5], 64, 64, 4
        $region16: #{tpu_custom_call.1} parent=11 // pred_fallthru
          _
        // Predicated region
        $region17: #{tpu_custom_call.1} parent=11 // pred_check
          %p224 = pneg %p86
        $region18: #{tpu_custom_call.1} parent=11 // pred_check_branch
          %226 = sbr.rel (%p224) target = $region20
        $region19: #{tpu_custom_call.1} parent=11 // pred_region
          _
        $region20: #{tpu_custom_call.1} parent=11 // pred_fallthru
          _
        // Predicated region
        $region21: #{tpu_custom_call.1} parent=11 // pred_check
          %p227 = pneg %p107
        $region22: #{tpu_custom_call.1} parent=11 // pred_check_branch
          %229 = sbr.rel (%p227) target = $region24
        $region23: #{tpu_custom_call.1} parent=11 // pred_region
          %s231 = ssub.s32 1024, 1024
          %232 = vsyncadd [#allocation5], %s231
          %s233 = sshll.u32 [#allocation6], 4
          %s234 = int_to_ptr.vmem [resolvable:$true] %s233
          %239 = dma.hbm_to_vmem [thread:$0]  %s3, 1024, %s234, [#allocation5], 64, 64, 4
        $region24: #{tpu_custom_call.1} parent=11 // pred_fallthru
          _
        // Predicated region
        $region25: #{tpu_custom_call.1} parent=11 // pred_check
          %p240 = pneg %p128
        $region26: #{tpu_custom_call.1} parent=11 // pred_check_branch
          %242 = sbr.rel (%p240) target = $region28
        $region27: #{tpu_custom_call.1} parent=11 // pred_region
          _
        $region28: #{tpu_custom_call.1} parent=11 // pred_fallthru
          _
        // Predicated region
        $region29: #{tpu_custom_call.1} parent=11 // pred_check
          %p243 = pneg %p149
        $region30: #{tpu_custom_call.1} parent=11 // pred_check_branch
          %245 = sbr.rel (%p243) target = $region32
        $region31: #{tpu_custom_call.1} parent=11 // pred_region
          %s247 = ssub.s32 1024, 1024
          %248 = vsyncadd [#allocation8], %s247
          %s249 = sshll.u32 [#allocation7], 4
          %s250 = int_to_ptr.vmem [resolvable:$true] %s249
          %255 = dma.hbm_to_vmem [thread:$0]  %s5, 1024, %s250, [#allocation8], 64, 64, 4
        $region32: #{tpu_custom_call.1} parent=11 // pred_fallthru
          _
        // Predicated region
        $region33: #{tpu_custom_call.1} parent=11 // pred_check
          %p256 = pneg %p170
        $region34: #{tpu_custom_call.1} parent=11 // pred_check_branch
          %258 = sbr.rel (%p256) target = $region36
        $region35: #{tpu_custom_call.1} parent=11 // pred_region
          _
        $region36: #{tpu_custom_call.1} parent=11 // pred_fallthru
          _
      $region12: #{tpu_custom_call.1} parent=5 // pred_fallthru
        _
      %p259 = scmp.lt.s32.totalorder %s18, 2
      // Predicated region
      $region37: #{tpu_custom_call.1} parent=5 // pred_check
        %p260 = pneg %p259
      $region38: #{tpu_custom_call.1} parent=5 // pred_check_branch
        %262 = sbr.rel (%p260) target = $region40
      $region39: #{tpu_custom_call.1} parent=5 // pred_region
        // Predicated region
        $region41: #{tpu_custom_call.1} parent=39 // pred_check
          %p263 = pneg %p38
        $region42: #{tpu_custom_call.1} parent=39 // pred_check_branch
          %265 = sbr.rel (%p263) target = $region44
        $region43: #{tpu_custom_call.1} parent=39 // pred_region
          %s266 = sand.u32 %s28, 1
          %s267 = scalar_lea.sflag [#allocation3], %s266
          %s268 = sand.u32 %s28, 1
          %s269 = smul.addr %s268, 8
          %s270 = scalar_lea.vmem [#allocation2], %s269
          %s272 = ssub.s32 128, 128
          %273 = vsyncadd %s267, %s272
          %s274 = smul.addr %s18, 128
          %s275 = scalar_lea.hbm %s0, %s274
          %s277 = sshll.u32 %s270, 4
          %s278 = int_to_ptr.vmem [resolvable:$true] %s277
          %280 = dma.hbm_to_vmem [thread:$0]  %s275, 128, %s278, %s267
        $region44: #{tpu_custom_call.1} parent=39 // pred_fallthru
          _
      $region40: #{tpu_custom_call.1} parent=5 // pred_fallthru
        _
      %p281 = scmp.le.s32.totalorder 1, %s18
      %p282 = scmp.lt.s32.totalorder %s18, 3
      %p283 = pnand %p281, %p282
      %p284 = pneg %p283
      // Predicated region
      $region45: #{tpu_custom_call.1} parent=5 // pred_check
        _
      $region46: #{tpu_custom_call.1} parent=5 // pred_check_branch
        %286 = sbr.rel (%p283) target = $region48
      $region47: #{tpu_custom_call.1} parent=5 // pred_region
        %s287 = ssub.s32 %s18, 1
        %s288 = sand.u32 %s31, 1
        %s289 = scalar_lea.sflag [#allocation3], %s288
        %s290 = sand.u32 %s31, 1
        %s291 = smul.addr %s290, 8
        %s292 = scalar_lea.vmem [#allocation2], %s291
        // Predicated region
        $region49: #{tpu_custom_call.1} parent=47 // pred_check
          %p293 = pneg %p44
        $region50: #{tpu_custom_call.1} parent=47 // pred_check_branch
          %295 = sbr.rel (%p293) target = $region52
        $region51: #{tpu_custom_call.1} parent=47 // pred_region
          %296 = dma.done %s289, 128
        $region52: #{tpu_custom_call.1} parent=47 // pred_fallthru
          _
        // Predicated region
        $region53: #{tpu_custom_call.1} parent=47 // pred_check
          %p297 = pneg %p65
        $region54: #{tpu_custom_call.1} parent=47 // pred_check_branch
          %299 = sbr.rel (%p297) target = $region56
        $region55: #{tpu_custom_call.1} parent=47 // pred_region
          %300 = dma.done [#allocation5], 128
        $region56: #{tpu_custom_call.1} parent=47 // pred_fallthru
          _
        // Predicated region
        $region57: #{tpu_custom_call.1} parent=47 // pred_check
          %p301 = pneg %p107
        $region58: #{tpu_custom_call.1} parent=47 // pred_check_branch
          %303 = sbr.rel (%p301) target = $region60
        $region59: #{tpu_custom_call.1} parent=47 // pred_region
          %304 = dma.done [#allocation5], 1024
        $region60: #{tpu_custom_call.1} parent=47 // pred_fallthru
          _
        // Predicated region
        $region61: #{tpu_custom_call.1} parent=47 // pred_check
          %p305 = pneg %p149
        $region62: #{tpu_custom_call.1} parent=47 // pred_check_branch
          %307 = sbr.rel (%p305) target = $region64
        $region63: #{tpu_custom_call.1} parent=47 // pred_region
          %308 = dma.done [#allocation8], 1024
        $region64: #{tpu_custom_call.1} parent=47 // pred_fallthru
          _
        %s309 = sand.u32 %s31, 1
        %s310 = scalar_lea.sflag [#allocation3], %s309
        %s311 = sand.u32 %s31, 1
        %s312 = smul.addr %s311, 8
        %s313 = scalar_lea.vmem [#allocation2], %s312
        %p314 = pneg %p44
        %p315 = pneg %p41
        %p316 = pneg %p65
        %p317 = pneg %p62
        %p318 = pneg %p86
        %p319 = pneg %p83
        %p320 = pneg %p107
        %p321 = pneg %p104
        %p322 = pneg %p128
        %p323 = pneg %p125
        %p324 = pneg %p149
        %p325 = pneg %p146
        %p326 = pneg %p170
        %p327 = pneg %p167
        %p328 = pneg %p196
        %p329 = pneg %p193
        %p330 = scmp.lt.s32.totalorder %s23, 1
        %s331 = scalar_select %p330, %s23, 1
        %s332 = smul.addr %s331, 8
        %s333 = scalar_lea.vmem %s7, %s332
        %p334 = scmp.lt.s32.totalorder %s23, 1
        %s335 = scalar_select %p334, %s23, 1
        %s336 = smul.addr %s335, 8
        %s337 = scalar_lea.vmem %s7, %s336
        %v339 = vld [vmem:[%s292] sm:$0xff]
        %v340 = vpack.c.bf16 %v339, %v339
        %v341 = vld [vmem:[#allocation4] sm:$0xf]
        %v342 = vld [vmem:[#allocation4 + $0x4] sm:$0x1]
        %v343 = vld [vmem:[%s2] sm:$0x1]
        %v345 = vlaneseq
        %v346 = vshrl.u32 %v345, 7
        %v347 = vsub.s32 0, %v346
        %v348 = vrot.slane %v343, %v347
        %v352 = vunpack.c.l.b16 %v341
        %v353 = vunpack.c.l.b16 %v342
        %v354 = vpack.c.b16 %v353, %v352
        %vm355 = vcmask 72704
        %v357 = vsel %vm355, %v340, 0
        %vm359 = vcmask 1043456
        %vm360 = vcmask 1044480
        %v361 = vsel %vm359, 4294967295, 65535
        %v362 = vsel %vm360, %v361, 0
        %v364 = vand.u32 %v354, %v362
        %366 = vmatprep.subr.bf16.mxu0 0
        %367 = vmatpush1.bf16.msra.mxu0 %v364
        %368 = vmatprep.subr.bf16.mxu0 0
        %369 = vmatpush1.bf16.msra.mxu0 0
        %370 = vmatprep.subr.bf16.mxu0 0
        %371 = vmatpush1.bf16.msra.mxu0 0
        %372 = vmatprep.subr.bf16.mxu0 0
        %373 = vmatpush1.bf16.msra.mxu0 0
        %374 = vmatprep.subr.bf16.mxu0 0
        %375 = vmatpush1.bf16.msra.mxu0 0
        %376 = vmatprep.subr.bf16.mxu0 0
        %377 = vmatpush1.bf16.msra.mxu0 0
        %378 = vmatprep.subr.bf16.mxu0 0
        %379 = vmatpush1.bf16.msra.mxu0 0
        %380 = vmatprep.subr.bf16.mxu0 0
        %381 = vmatpush1.bf16.msra.mxu0 0
        %382 = vmatprep.subr.bf16.mxu0 0
        %383 = vmatpush1.bf16.msra.mxu0 0
        %384 = vmatprep.subr.bf16.mxu0 0
        %385 = vmatpush1.bf16.msra.mxu0 0
        %386 = vmatprep.subr.bf16.mxu0 0
        %387 = vmatpush1.bf16.msra.mxu0 0
        %388 = vmatprep.subr.bf16.mxu0 0
        %389 = vmatpush1.bf16.msra.mxu0 0
        %390 = vmatprep.subr.bf16.mxu0 0
        %391 = vmatpush1.bf16.msra.mxu0 0
        %392 = vmatprep.subr.bf16.mxu0 0
        %393 = vmatpush1.bf16.msra.mxu0 0
        %394 = vmatprep.subr.bf16.mxu0 0
        %395 = vmatpush1.bf16.msra.mxu0 0
        %396 = vmatprep.subr.bf16.mxu0 0
        %397 = vmatpush1.bf16.msra.mxu0 0
        %398 = vmatprep.mubr.bf16.mxu0 0
        %399 = vmatmul.mubr.bf16.gmra.mrb[0].mxu0 %v357
        %v400 = vpop.f32.mrb[0].mxu0
        %v401 = vadd.f32 %v348, %v400
        %v402 = vpop.f32.mrb[0].mxu0
        %v403 = vpop.f32.mrb[0].mxu0
        %v404 = vpop.f32.mrb[0].mxu0
        %405 = vdwg.mxu0
        %v406 = vxor.u32 %v401, 2147483648
        %v407 = vmul.f32 %v406, 1.442695
        %v408 = vpow.pop %v407
        %v409 = vadd.f32 %v408, 1.0
        %v410 = vrcp.pop %v409
        %v411 = vmul.f32 1.0, %v410
        %v412 = vpack.c.bf16 %v411, %v411
        %v413 = vld [vmem:[#allocation6] sm:$0xf]
        %v414 = vld [vmem:[#allocation6 + $0x4] sm:$0xf]
        %v415 = vld [vmem:[#allocation6 + $0x8] sm:$0xf]
        %v416 = vld [vmem:[#allocation6 + $0xc] sm:$0xf]
        %v417 = vld [vmem:[#allocation6 + $0x10] sm:$0xf]
        %v418 = vld [vmem:[#allocation6 + $0x14] sm:$0xf]
        %v419 = vld [vmem:[#allocation6 + $0x18] sm:$0xf]
        %v420 = vld [vmem:[#allocation6 + $0x1c] sm:$0xf]
        %v421 = vld [vmem:[#allocation6 + $0x20] sm:$0xf]
        %v422 = vld [vmem:[#allocation6 + $0x24] sm:$0xf]
        %v423 = vld [vmem:[#allocation6 + $0x28] sm:$0xf]
        %v424 = vld [vmem:[#allocation6 + $0x2c] sm:$0xf]
        %v425 = vld [vmem:[#allocation6 + $0x30] sm:$0xf]
        %v426 = vld [vmem:[#allocation6 + $0x34] sm:$0xf]
        %v427 = vld [vmem:[#allocation6 + $0x38] sm:$0xf]
        %v428 = vld [vmem:[#allocation6 + $0x3c] sm:$0xf]
        %v429 = vld [vmem:[%s4] sm:$0x1]
        %v431 = vlaneseq
        %v432 = vshrl.u32 %v431, 7
        %v433 = vsub.s32 0, %v432
        %v434 = vrot.slane %v429, %v433
        %v452 = vunpack.c.l.b16 %v413
        %v453 = vunpack.c.l.b16 %v414
        %v454 = vunpack.c.l.b16 %v415
        %v455 = vunpack.c.l.b16 %v416
        %v456 = vunpack.c.l.b16 %v417
        %v457 = vunpack.c.l.b16 %v418
        %v458 = vunpack.c.l.b16 %v419
        %v459 = vunpack.c.l.b16 %v420
        %v460 = vunpack.c.l.b16 %v421
        %v461 = vunpack.c.l.b16 %v422
        %v462 = vunpack.c.l.b16 %v423
        %v463 = vunpack.c.l.b16 %v424
        %v464 = vunpack.c.l.b16 %v425
        %v465 = vunpack.c.l.b16 %v426
        %v466 = vunpack.c.l.b16 %v427
        %v467 = vunpack.c.l.b16 %v428
        %v468 = vpack.c.b16 %v453, %v452
        %v469 = vpack.c.b16 %v455, %v454
        %v470 = vpack.c.b16 %v457, %v456
        %v471 = vpack.c.b16 %v459, %v458
        %v472 = vpack.c.b16 %v461, %v460
        %v473 = vpack.c.b16 %v463, %v462
        %v474 = vpack.c.b16 %v465, %v464
        %v475 = vpack.c.b16 %v467, %v466
        %484 = vmatprep.subr.bf16.mxu0 0
        %485 = vmatpush1.bf16.msra.mxu0 %v468
        %486 = vmatprep.subr.bf16.mxu0 0
        %487 = vmatpush1.bf16.msra.mxu0 %v469
        %488 = vmatprep.subr.bf16.mxu0 0
        %489 = vmatpush1.bf16.msra.mxu0 %v470
        %490 = vmatprep.subr.bf16.mxu0 0
        %491 = vmatpush1.bf16.msra.mxu0 %v471
        %492 = vmatprep.subr.bf16.mxu0 0
        %493 = vmatpush1.bf16.msra.mxu0 %v472
        %494 = vmatprep.subr.bf16.mxu0 0
        %495 = vmatpush1.bf16.msra.mxu0 %v473
        %496 = vmatprep.subr.bf16.mxu0 0
        %497 = vmatpush1.bf16.msra.mxu0 %v474
        %498 = vmatprep.subr.bf16.mxu0 0
        %499 = vmatpush1.bf16.msra.mxu0 %v475
        %500 = vmatprep.subr.bf16.mxu0 0
        %501 = vmatpush1.bf16.msra.mxu0 0
        %502 = vmatprep.subr.bf16.mxu0 0
        %503 = vmatpush1.bf16.msra.mxu0 0
        %504 = vmatprep.subr.bf16.mxu0 0
        %505 = vmatpush1.bf16.msra.mxu0 0
        %506 = vmatprep.subr.bf16.mxu0 0
        %507 = vmatpush1.bf16.msra.mxu0 0
        %508 = vmatprep.subr.bf16.mxu0 0
        %509 = vmatpush1.bf16.msra.mxu0 0
        %510 = vmatprep.subr.bf16.mxu0 0
        %511 = vmatpush1.bf16.msra.mxu0 0
        %512 = vmatprep.subr.bf16.mxu0 0
        %513 = vmatpush1.bf16.msra.mxu0 0
        %514 = vmatprep.subr.bf16.mxu0 0
        %515 = vmatpush1.bf16.msra.mxu0 0
        %516 = vmatprep.mubr.bf16.mxu0 0
        %517 = vmatmul.mubr.bf16.gmra.mrb[0].mxu0 %v412
        %v518 = vpop.f32.mrb[0].mxu0
        %v519 = vadd.f32 %v434, %v518
        %v520 = vpop.f32.mrb[0].mxu0
        %v521 = vpop.f32.mrb[0].mxu0
        %v522 = vpop.f32.mrb[0].mxu0
        %523 = vdwg.mxu0
        %v524 = vxor.u32 %v519, 2147483648
        %v525 = vmul.f32 %v524, 1.442695
        %v526 = vpow.pop %v525
        %v527 = vadd.f32 %v526, 1.0
        %v528 = vrcp.pop %v527
        %v529 = vmul.f32 1.0, %v528
        %v530 = vpack.c.bf16 %v529, %v529
        %v531 = vld [vmem:[#allocation7] sm:$0xf]
        %v532 = vld [vmem:[#allocation7 + $0x4] sm:$0xf]
        %v533 = vld [vmem:[#allocation7 + $0x8] sm:$0xf]
        %v534 = vld [vmem:[#allocation7 + $0xc] sm:$0xf]
        %v535 = vld [vmem:[#allocation7 + $0x10] sm:$0xf]
        %v536 = vld [vmem:[#allocation7 + $0x14] sm:$0xf]
        %v537 = vld [vmem:[#allocation7 + $0x18] sm:$0xf]
        %v538 = vld [vmem:[#allocation7 + $0x1c] sm:$0xf]
        %v539 = vld [vmem:[#allocation7 + $0x20] sm:$0xf]
        %v540 = vld [vmem:[#allocation7 + $0x24] sm:$0xf]
        %v541 = vld [vmem:[#allocation7 + $0x28] sm:$0xf]
        %v542 = vld [vmem:[#allocation7 + $0x2c] sm:$0xf]
        %v543 = vld [vmem:[#allocation7 + $0x30] sm:$0xf]
        %v544 = vld [vmem:[#allocation7 + $0x34] sm:$0xf]
        %v545 = vld [vmem:[#allocation7 + $0x38] sm:$0xf]
        %v546 = vld [vmem:[#allocation7 + $0x3c] sm:$0xf]
        %v547 = vld [vmem:[%s6] sm:$0x1]
        %v549 = vlaneseq
        %v550 = vshrl.u32 %v549, 7
        %v551 = vsub.s32 0, %v550
        %v552 = vrot.slane %v547, %v551
        %v570 = vunpack.c.l.b16 %v531
        %v571 = vunpack.c.l.b16 %v532
        %v572 = vunpack.c.l.b16 %v533
        %v573 = vunpack.c.l.b16 %v534
        %v574 = vunpack.c.l.b16 %v535
        %v575 = vunpack.c.l.b16 %v536
        %v576 = vunpack.c.l.b16 %v537
        %v577 = vunpack.c.l.b16 %v538
        %v578 = vunpack.c.l.b16 %v539
        %v579 = vunpack.c.l.b16 %v540
        %v580 = vunpack.c.l.b16 %v541
        %v581 = vunpack.c.l.b16 %v542
        %v582 = vunpack.c.l.b16 %v543
        %v583 = vunpack.c.l.b16 %v544
        %v584 = vunpack.c.l.b16 %v545
        %v585 = vunpack.c.l.b16 %v546
        %v586 = vpack.c.b16 %v571, %v570
        %v587 = vpack.c.b16 %v573, %v572
        %v588 = vpack.c.b16 %v575, %v574
        %v589 = vpack.c.b16 %v577, %v576
        %v590 = vpack.c.b16 %v579, %v578
        %v591 = vpack.c.b16 %v581, %v580
        %v592 = vpack.c.b16 %v583, %v582
        %v593 = vpack.c.b16 %v585, %v584
        %602 = vmatprep.subr.bf16.mxu0 0
        %603 = vmatpush1.bf16.msra.mxu0 %v586
        %604 = vmatprep.subr.bf16.mxu0 0
        %605 = vmatpush1.bf16.msra.mxu0 %v587
        %606 = vmatprep.subr.bf16.mxu0 0
        %607 = vmatpush1.bf16.msra.mxu0 %v588
        %608 = vmatprep.subr.bf16.mxu0 0
        %609 = vmatpush1.bf16.msra.mxu0 %v589
        %610 = vmatprep.subr.bf16.mxu0 0
        %611 = vmatpush1.bf16.msra.mxu0 %v590
        %612 = vmatprep.subr.bf16.mxu0 0
        %613 = vmatpush1.bf16.msra.mxu0 %v591
        %614 = vmatprep.subr.bf16.mxu0 0
        %615 = vmatpush1.bf16.msra.mxu0 %v592
        %616 = vmatprep.subr.bf16.mxu0 0
        %617 = vmatpush1.bf16.msra.mxu0 %v593
        %618 = vmatprep.subr.bf16.mxu0 0
        %619 = vmatpush1.bf16.msra.mxu0 0
        %620 = vmatprep.subr.bf16.mxu0 0
        %621 = vmatpush1.bf16.msra.mxu0 0
        %622 = vmatprep.subr.bf16.mxu0 0
        %623 = vmatpush1.bf16.msra.mxu0 0
        %624 = vmatprep.subr.bf16.mxu0 0
        %625 = vmatpush1.bf16.msra.mxu0 0
        %626 = vmatprep.subr.bf16.mxu0 0
        %627 = vmatpush1.bf16.msra.mxu0 0
        %628 = vmatprep.subr.bf16.mxu0 0
        %629 = vmatpush1.bf16.msra.mxu0 0
        %630 = vmatprep.subr.bf16.mxu0 0
        %631 = vmatpush1.bf16.msra.mxu0 0
        %632 = vmatprep.subr.bf16.mxu0 0
        %633 = vmatpush1.bf16.msra.mxu0 0
        %634 = vmatprep.mubr.bf16.mxu0 0
        %635 = vmatmul.mubr.bf16.gmra.mrb[0].mxu0 %v530
        %v636 = vpop.f32.mrb[0].mxu0
        %v637 = vadd.f32 %v552, %v636
        %v638 = vpop.f32.mrb[0].mxu0
        %v639 = vpop.f32.mrb[0].mxu0
        %v640 = vpop.f32.mrb[0].mxu0
        %641 = vdwg.mxu0
        %v642 = vtanh.pop %v637
        %v643 = vmul.f32 %v637, %v637
        %644 = vadd.xlane.f32.xlu0 %v643
        %v645 = vpop.xlane.xlu0 %644
        %v646 = vsub.f32 %v645, %v643
        %v647 = vmul.f32 %v339, 0.4
        %v648 = vmul.f32 %v647, -0.5
        %v649 = vmul.f32 %v648, %v647
        %v650 = vmul.f32 %v649, 1.442695
        %v651 = vpow.pop %v650
        %v652 = vmul.f32 %v651, 7.9788456
        %654 = vrot.lane.b32.xlu0 %v642, 9
        %v655 = vpop.permute.xlu0 %654
        %v657 = vmul.f32 %v652, %v655
        %v658 = vrsqrt.pop %v646
        %660 = vrot.lane.b32.xlu0 %v658, 9
        %v661 = vpop.permute.xlu0 %660
        %v663 = vmul.f32 %v657, %v661
        %665 = vset.pattern.permute.xlu0 8
        %666 = vperm.xlu0 %665, %v663
        %v667 = vpop.permute.xlu0 %666
        %v669 = vmul.f32 %v637, %v667
        %vm670 = vcmask 48128
        %671 = vst.msk [vmem:[%s337] sm:$0xff] %vm670, %v669
        %p672 = scmp.lt.s32.totalorder %s23, 1
        %s673 = scalar_select %p672, %s23, 1
        %s674 = smul.addr %s673, 8
        %s675 = scalar_lea.vmem %s7, %s674
        // Predicated region
        $region65: #{tpu_custom_call.1} parent=47 // pred_check
          %p676 = pneg %p193
        $region66: #{tpu_custom_call.1} parent=47 // pred_check_branch
          %678 = sbr.rel (%p676) target = $region68
        $region67: #{tpu_custom_call.1} parent=47 // pred_region
          _
        $region68: #{tpu_custom_call.1} parent=47 // pred_fallthru
          _
      $region48: #{tpu_custom_call.1} parent=5 // pred_fallthru
        _
      %p679 = scmp.le.s32.totalorder 2, %s18
      // Predicated region
      $region69: #{tpu_custom_call.1} parent=5 // pred_check
        %p680 = pneg %p679
      $region70: #{tpu_custom_call.1} parent=5 // pred_check_branch
        %682 = sbr.rel (%p680) target = $region72
      $region71: #{tpu_custom_call.1} parent=5 // pred_region
        %s683 = ssub.s32 %s18, 2
        // Predicated region
        $region73: #{tpu_custom_call.1} parent=71 // pred_check
          %p684 = pneg %p199
        $region74: #{tpu_custom_call.1} parent=71 // pred_check_branch
          %686 = sbr.rel (%p684) target = $region76
        $region75: #{tpu_custom_call.1} parent=71 // pred_region
          %p687 = scmp.lt.s32.totalorder %s24, 1
          %s688 = scalar_select %p687, %s24, 1
          %s689 = smul.addr %s688, 8
          %s690 = scalar_lea.vmem %s7, %s689
        $region76: #{tpu_custom_call.1} parent=71 // pred_fallthru
          _
      $region72: #{tpu_custom_call.1} parent=5 // pred_fallthru
        _
    $region6: #{tpu_custom_call.1} parent=1 // loop_footer
      %s22 = sadd.s32 1, %s18
    $region7: #{tpu_custom_call.1} parent=1 // loop_footer_branch
      %17 = sbr.rel target = $region3
    $region8: #{tpu_custom_call.1} parent=1 // loop_exit
      _
    %691 = vsyncpa [#allocation3], 1
    %s692 = scalar_lea.sflag [#allocation3], 1
    %693 = vsyncpa %s692, 1
    %694 = vsyncpa [#allocation5], 1
    %695 = vsyncpa [#allocation8], 1

</llo_original>
